<compile_context>
chip_gen: v5e
topology: v5e:2x2
jax: 0.10.0
libtpu: 0.0.40
codegen_flags: <defaults>
</compile_context>

<pallas_src>
import jax
import jax.numpy as jnp
from jax import lax
from jax.experimental import pallas as pl
from jax.experimental.pallas import tpu as pltpu

_LANE = 128
_CANDIDATE_BLOCKS = (512, 256, 128, 64, 32, 16, 8)


def head_kernel(x_ref, w_ref, b_ref, o_ref, k_scr, v_scr):
    # x_ref : (Tp, D)    full (padded) sequence for this batch element
    # w_ref : (D, 3*Hp)  fused zero-padded [Wq | Wk | Wv]   (compute dtype)
    # b_ref : (1, 3*Hp)  fused zero-padded biases           (f32)
    # o_ref : (blk, Hp)  lane-dense output tile
    # k_scr, v_scr : (Tp, Hp) VMEM scratch holding K / V for this batch element
    qi = pl.program_id(1)
    Tp, D = x_ref.shape
    blk, Hp = o_ref.shape
    comp = k_scr.dtype

    # ---- K/V projection: once per batch element, in blk-row chunks -----------
    # NOTE: correct only while the q-tile grid axis stays "arbitrary".
    @pl.when(qi == 0)
    def _():
        def fill(j, carry):
            r0 = pl.multiple_of(j * blk, blk)
            xs = x_ref[pl.ds(r0, blk), :].astype(comp)                       # (blk, D)
            k = jnp.dot(xs, w_ref[:, Hp:2 * Hp],
                        preferred_element_type=jnp.float32) + b_ref[:, Hp:2 * Hp]
            v = jnp.dot(xs, w_ref[:, 2 * Hp:],
                        preferred_element_type=jnp.float32) + b_ref[:, 2 * Hp:]
            k_scr[pl.ds(r0, blk), :] = k.astype(comp)
            v_scr[pl.ds(r0, blk), :] = v.astype(comp)
            return carry

        lax.fori_loop(0, Tp // blk, fill, 0)

    # ---- Q projection for this query tile (scale folded into q) --------------
    r0 = pl.multiple_of(qi * blk, blk)
    x_q = x_ref[pl.ds(r0, blk), :].astype(comp)                              # (blk, D)
    scale = jnp.float32(D) ** -0.5              # d_model ** -0.5, as in the module
    q = (jnp.dot(x_q, w_ref[:, :Hp], preferred_element_type=jnp.float32)
         + b_ref[:, :Hp]) * scale
    q = q.astype(comp)                                                       # (blk, Hp)

    # ---- flash-style online softmax over KV tiles -----------------------------
    def kv_step(j, m_i, l_i, acc, masked):
        c0 = pl.multiple_of(j * blk, blk)
        k_t = k_scr[pl.ds(c0, blk), :]                                       # (blk, Hp)
        s = lax.dot_general(q, k_t, (((1,), (1,)), ((), ())),
                            preferred_element_type=jnp.float32)              # (blk, blk)
        if masked:  # diagonal tile only; local indices -> identical mask for every qi
            tri = (lax.broadcasted_iota(jnp.int32, (blk, blk), 1)
                   <= lax.broadcasted_iota(jnp.int32, (blk, blk), 0))
            s = jnp.where(tri, s, -jnp.inf)
        m_new = jnp.maximum(m_i, s.max(axis=-1, keepdims=True))
        alpha = jnp.exp(m_i - m_new)
        p = jnp.exp(s - m_new)
        l_new = alpha * l_i + p.sum(axis=-1, keepdims=True)
        v_t = v_scr[pl.ds(c0, blk), :]
        acc_new = alpha * acc + jnp.dot(p.astype(comp), v_t,
                                        preferred_element_type=jnp.float32)
        return m_new, l_new, acc_new

    m0 = jnp.full((blk, 1), -jnp.inf, jnp.float32)
    l0 = jnp.zeros((blk, 1), jnp.float32)
    a0 = jnp.zeros((blk, Hp), jnp.float32)

    # Off-diagonal tiles: fully visible, no mask; tiles above the diagonal skipped.
    m_i, l_i, acc = lax.fori_loop(
        0, qi, lambda j, c: kv_step(j, *c, masked=False), (m0, l0, a0))
    # Diagonal tile: triangular mask (computed once per q-tile, outside the loop).
    m_i, l_i, acc = kv_step(qi, m_i, l_i, acc, masked=True)

    o_ref[...] = (acc * pl.reciprocal(l_i, approx=True)).astype(o_ref.dtype)


def _vmem_budget_bytes():
    try:
        cap = int(pltpu.get_tpu_info().vmem_capacity_bytes)
    except Exception:
        cap = 64 * 1024 * 1024          # conservative: v7x has 64 MiB per TensorCore
    return min(int(cap * 0.85), 100 * 1024 * 1024)


def _pick_block(T, D, Hp, x_bytes, w_bytes, comp_bytes, out_bytes, budget):
    """Largest candidate block whose estimated VMEM footprint fits the budget."""
    pick = None
    for blk in _CANDIDATE_BLOCKS:
        if blk > max(8, T):
            continue
        Tp = -(-T // blk) * blk
        need = (2 * Tp * D * x_bytes            # x tile (double-buffered)
                + 2 * D * 3 * Hp * w_bytes      # fused weights (double-buffered)
                + 2 * 3 * Hp * 4                # fused bias (f32)
                + 2 * blk * Hp * out_bytes      # output tile (double-buffered)
                + 2 * Tp * Hp * comp_bytes      # K / V scratch
                + 2 * blk * Hp * 4              # q + acc (f32)
                + 6 * blk * blk * 4)            # score / exp temporaries (f32)
        pick = (blk, Tp)
        if need <= budget:
            break
    return pick


def head_forward(x, wq, bq, wk, bk, wv, bv, *, compute_dtype=None, q_block=None):
    """x: (B, T, D); w*: (D, H) (= nn.Linear.weight.T); b*: (H,) -> (B, T, H)."""
    B, T, D = x.shape
    H = wq.shape[1]
    Hp = -(-H // _LANE) * _LANE                    # lane-pad head dim -> dense stores

    # MXU compute dtype: bf16 by default (f32 accumulation everywhere);
    # pass compute_dtype=jnp.float32 for strict f32 parity with the reference.
    comp = jnp.dtype(jnp.bfloat16) if compute_dtype is None else jnp.dtype(compute_dtype)

    pad_w = lambda w: jnp.pad(w, ((0, 0), (0, Hp - H))).astype(comp)
    pad_b = lambda v: jnp.pad(v, (0, Hp - H)).astype(jnp.float32)
    w_fused = jnp.concatenate([pad_w(wq), pad_w(wk), pad_w(wv)], axis=1)     # (D, 3*Hp)
    b_fused = jnp.concatenate([pad_b(bq), pad_b(bk), pad_b(bv)])[None, :]    # (1, 3*Hp)

    budget = _vmem_budget_bytes()
    x_bytes = jnp.dtype(x.dtype).itemsize
    if q_block is None:
        blk, Tp = _pick_block(T, D, Hp, x_bytes, comp.itemsize, comp.itemsize,
                              x_bytes, budget)
    else:
        blk = q_block
        Tp = -(-T // blk) * blk

    if Tp != T:
        # Pad T up to a block multiple; padded rows sit above every real row's
        # causal window so they never contribute, and are sliced off below.
        x = jnp.pad(x, ((0, 0), (0, Tp - T), (0, 0)))
    n_q = Tp // blk

    out_padded = pl.pallas_call(
        head_kernel,
        out_shape=jax.ShapeDtypeStruct((B, Tp, Hp), x.dtype),
        grid_spec=pltpu.PrefetchScalarGridSpec(
            num_scalar_prefetch=0,
            grid=(B, n_q),
            in_specs=[
                pl.BlockSpec((None, Tp, D), lambda b, qi: (b, 0, 0)),    # x: resident per batch
                pl.BlockSpec((D, 3 * Hp), lambda b, qi: (0, 0)),         # fused padded weights
                pl.BlockSpec((1, 3 * Hp), lambda b, qi: (0, 0)),         # fused padded biases
            ],
            out_specs=pl.BlockSpec((None, blk, Hp), lambda b, qi: (b, qi, 0)),
            scratch_shapes=[
                pltpu.VMEM((Tp, Hp), comp),     # K cache for current batch element
                pltpu.VMEM((Tp, Hp), comp),     # V cache for current batch element
            ],
        ),
        compiler_params=pltpu.CompilerParams(
            # Only the batch axis may be "parallel": the q-tile axis must stay
            # "arbitrary" because K/V scratch is filled at qi == 0. With B == 1
            # the second TensorCore (v7x) idles by design.
            dimension_semantics=("parallel", "arbitrary"),
            vmem_limit_bytes=budget,
        ),
    )(x, w_fused, b_fused)

    # TODO(synk): skip this slice when the consumer accepts the lane-padded
    # (B, Tp, Hp) layout directly.
    return out_padded[:, :T, :H]


def reference_forward(x, wq, bq, wk, bk, wv, bv):
    """Pure-JAX reference mirroring the PyTorch module."""
    B, T, D = x.shape
    q = x @ wq + bq
    k = x @ wk + bk
    v = x @ wv + bv
    score = (q @ jnp.swapaxes(k, -2, -1)) * (D ** -0.5)
    mask = jnp.tril(jnp.ones((T, T)))
    score = jnp.where(mask == 0, -jnp.inf, score)
    score = jax.nn.softmax(score, axis=-1)
    return score @ v


if __name__ == "__main__":
    # Small shapes consistent with the module: B=2, T=8, d_model=32, d_head=16
    B, T, D, H = 2, 8, 32, 16

    key = jax.random.PRNGKey(0)
    kx, kq, kbq, kk, kbk, kv, kbv = jax.random.split(key, 7)

    x = jax.random.normal(kx, (B, T, D), dtype=jnp.float32)
    bound = 1.0 / (D ** 0.5)            # mimics nn.Linear's uniform init range
    wq = jax.random.uniform(kq, (D, H), jnp.float32, -bound, bound)
    bq = jax.random.uniform(kbq, (H,), jnp.float32, -bound, bound)
    wk = jax.random.uniform(kk, (D, H), jnp.float32, -bound, bound)
    bk = jax.random.uniform(kbk, (H,), jnp.float32, -bound, bound)
    wv = jax.random.uniform(kv, (D, H), jnp.float32, -bound, bound)
    bv = jax.random.uniform(kbv, (H,), jnp.float32, -bound, bound)

    ref = reference_forward(x, wq, bq, wk, bk, wv, bv)

    # 1) strict f32 MXU path
    out_f32 = jax.block_until_ready(
        head_forward(x, wq, bq, wk, bk, wv, bv, compute_dtype=jnp.float32))
    assert out_f32.shape == (B, T, H)
    assert jnp.allclose(out_f32, ref, atol=2e-3, rtol=2e-3), "f32 mismatch vs reference"

    # 2) default mixed-precision path (bf16 MXU inputs, f32 accumulation)
    out_mix = jax.block_until_ready(head_forward(x, wq, bq, wk, bk, wv, bv))
    assert out_mix.shape == (B, T, H)
    assert jnp.allclose(out_mix, ref, atol=5e-2, rtol=5e-2), "bf16-compute mismatch"

    # 3) bf16 end-to-end
    to_bf16 = lambda a: a.astype(jnp.bfloat16)
    out_bf16 = jax.block_until_ready(
        head_forward(to_bf16(x), to_bf16(wq), to_bf16(bq), to_bf16(wk), to_bf16(bk),
                     to_bf16(wv), to_bf16(bv)))
    assert out_bf16.shape == (B, T, H)
    assert jnp.allclose(out_bf16.astype(jnp.float32), ref, atol=6e-2, rtol=6e-2), \
        "bf16 mismatch vs reference"

    # 4) ragged T (no small divisor): handled by padding T up to a block multiple
    T2 = 11
    x2 = jax.random.normal(kx, (B, T2, D), dtype=jnp.float32)
    out2 = jax.block_until_ready(
        head_forward(x2, wq, bq, wk, bk, wv, bv, compute_dtype=jnp.float32))
    ref2 = reference_forward(x2, wq, bq, wk, bk, wv, bv)
    assert out2.shape == (B, T2, H)
    assert jnp.allclose(out2, ref2, atol=2e-3, rtol=2e-3), "ragged-T mismatch"

    print("KERNEL_OK")
</pallas_src>

<mosaic_0001>
module attributes {stable_mosaic.version = 11 : i64} {
  func.func @head_kernel(%arg0: i32, %arg1: i32, %arg2: memref<1x8x32xf32, #tpu.memory_space<vmem>>, %arg3: memref<32x384xf32, #tpu.memory_space<vmem>>, %arg4: memref<1x384xf32, #tpu.memory_space<vmem>>, %arg5: memref<1x8x128xf32, #tpu.memory_space<vmem>>, %arg6: memref<8x128xf32, #tpu.memory_space<vmem>>, %arg7: memref<8x128xf32, #tpu.memory_space<vmem>>) attributes {dimension_semantics = [#tpu.dimension_semantics<parallel>, #tpu.dimension_semantics<arbitrary>], iteration_bounds = array<i64: 2, 1>, scalar_prefetch = 0 : i64, scratch_operands = 2 : i64, tpu.core_type = #tpu.core_type<tc>, window_params = [{transform_indices = @transform_0, window_bounds = array<i64: 1, 8, 32>}, {pipeline_mode = #tpu.pipeline_mode<synchronous>, transform_indices = @transform_1, window_bounds = array<i64: 32, 384>}, {pipeline_mode = #tpu.pipeline_mode<synchronous>, transform_indices = @transform_2, window_bounds = array<i64: 1, 384>}, {transform_indices = @transform_3, window_bounds = array<i64: 1, 8, 128>}]} {
    %c0_i32 = arith.constant 0 : i32
    %0 = arith.cmpi eq, %arg1, %c0_i32 : i32
    %1 = arith.extui %0 : i1 to i32
    %c0_i32_0 = arith.constant 0 : i32
    %2 = arith.cmpi ne, %1, %c0_i32_0 : i32
    scf.if %2 {
      %c0_i32_23 = arith.constant 0 : i32
      %c8_i32_24 = arith.constant 8 : i32
      %56 = arith.muli %c0_i32_23, %c8_i32_24 : i32
      %57 = tpu.assume_multiple %56, 8 : i32
      %c0_25 = arith.constant 0 : index
      %58 = arith.index_cast %57 : i32 to index
      %c0_26 = arith.constant 0 : index
      %59 = vector.load %arg2[%c0_25, %58, %c0_26] : memref<1x8x32xf32, #tpu.memory_space<vmem>>, vector<1x8x32xf32>
      %60 = vector.shape_cast %59 : vector<1x8x32xf32> to vector<8x32xf32>
      %c0_27 = arith.constant 0 : index
      %c128 = arith.constant 128 : index
      %61 = vector.load %arg3[%c0_27, %c128] : memref<32x384xf32, #tpu.memory_space<vmem>>, vector<32x128xf32>
      %cst_28 = arith.constant dense<0.000000e+00> : vector<8x128xf32>
      %62 = tpu.matmul %60, %61, %cst_28 {dimension_numbers = #tpu.dot_dimension_numbers<[1], [0], [0], [1], [0, 0, 1, 1], [], []>} : vector<8x32xf32>, vector<32x128xf32>, vector<8x128xf32> -> vector<8x128xf32>
      %c0_29 = arith.constant 0 : index
      %c128_30 = arith.constant 128 : index
      %63 = vector.load %arg4[%c0_29, %c128_30] : memref<1x384xf32, #tpu.memory_space<vmem>>, vector<1x128xf32>
      %64 = vector.broadcast %63 : vector<1x128xf32> to vector<8x128xf32>
      %65 = arith.addf %62, %64 : vector<8x128xf32>
      %c0_31 = arith.constant 0 : index
      %c256 = arith.constant 256 : index
      %66 = vector.load %arg3[%c0_31, %c256] : memref<32x384xf32, #tpu.memory_space<vmem>>, vector<32x128xf32>
      %cst_32 = arith.constant dense<0.000000e+00> : vector<8x128xf32>
      %67 = tpu.matmul %60, %66, %cst_32 {dimension_numbers = #tpu.dot_dimension_numbers<[1], [0], [0], [1], [0, 0, 1, 1], [], []>} : vector<8x32xf32>, vector<32x128xf32>, vector<8x128xf32> -> vector<8x128xf32>
      %c0_33 = arith.constant 0 : index
      %c256_34 = arith.constant 256 : index
      %68 = vector.load %arg4[%c0_33, %c256_34] : memref<1x384xf32, #tpu.memory_space<vmem>>, vector<1x128xf32>
      %69 = vector.broadcast %68 : vector<1x128xf32> to vector<8x128xf32>
      %70 = arith.addf %67, %69 : vector<8x128xf32>
      %71 = arith.index_cast %57 : i32 to index
      %c0_35 = arith.constant 0 : index
      %72 = vector.load %arg6[%71, %c0_35] : memref<8x128xf32, #tpu.memory_space<vmem>>, vector<8x128xf32>
      tpu.vector_store %arg6[%71, %c0_35], %65 {strides = array<i32>} : memref<8x128xf32, #tpu.memory_space<vmem>>, vector<8x128xf32>,
      %73 = arith.index_cast %57 : i32 to index
      %c0_36 = arith.constant 0 : index
      %74 = vector.load %arg7[%73, %c0_36] : memref<8x128xf32, #tpu.memory_space<vmem>>, vector<8x128xf32>
      tpu.vector_store %arg7[%73, %c0_36], %70 {strides = array<i32>} : memref<8x128xf32, #tpu.memory_space<vmem>>, vector<8x128xf32>,
      %c1_i32_37 = arith.constant 1 : i32
    } else {
    }
    %c8_i32 = arith.constant 8 : i32
    %3 = arith.muli %arg1, %c8_i32 : i32
    %4 = tpu.assume_multiple %3, 8 : i32
    %c0 = arith.constant 0 : index
    %5 = arith.index_cast %4 : i32 to index
    %c0_1 = arith.constant 0 : index
    %6 = vector.load %arg2[%c0, %5, %c0_1] : memref<1x8x32xf32, #tpu.memory_space<vmem>>, vector<1x8x32xf32>
    %7 = vector.shape_cast %6 : vector<1x8x32xf32> to vector<8x32xf32>
    %cst = arith.constant 3.200000e+01 : f32
    %cst_2 = arith.constant -5.000000e-01 : f32
    %8 = math.powf %cst, %cst_2 : f32
    %c0_3 = arith.constant 0 : index
    %c0_4 = arith.constant 0 : index
    %9 = vector.load %arg3[%c0_3, %c0_4] : memref<32x384xf32, #tpu.memory_space<vmem>>, vector<32x128xf32>
    %cst_5 = arith.constant dense<0.000000e+00> : vector<8x128xf32>
    %10 = tpu.matmul %7, %9, %cst_5 {dimension_numbers = #tpu.dot_dimension_numbers<[1], [0], [0], [1], [0, 0, 1, 1], [], []>} : vector<8x32xf32>, vector<32x128xf32>, vector<8x128xf32> -> vector<8x128xf32>
    %c0_6 = arith.constant 0 : index
    %c0_7 = arith.constant 0 : index
    %11 = vector.load %arg4[%c0_6, %c0_7] : memref<1x384xf32, #tpu.memory_space<vmem>>, vector<1x128xf32>
    %12 = vector.broadcast %11 : vector<1x128xf32> to vector<8x128xf32>
    %13 = arith.addf %10, %12 : vector<8x128xf32>
    %14 = vector.broadcast %8 : f32 to vector<8x128xf32>
    %15 = arith.mulf %13, %14 : vector<8x128xf32>
    %cst_8 = arith.constant 0xFF800000 : f32
    %16 = vector.broadcast %cst_8 : f32 to vector<8x1xf32>
    %cst_9 = arith.constant 0.000000e+00 : f32
    %17 = vector.broadcast %cst_9 : f32 to vector<8x1xf32>
    %cst_10 = arith.constant 0.000000e+00 : f32
    %18 = vector.broadcast %cst_10 : f32 to vector<8x128xf32>
    %c0_i32_11 = arith.constant 0 : i32
    %19 = arith.subi %arg1, %c0_i32_11 : i32
    %20 = arith.addi %c0_i32_11, %19 : i32
    %c1_i32 = arith.constant 1 : i32
    %21:3 = scf.for %arg8 = %c0_i32_11 to %20 step %c1_i32 iter_args(%arg9 = %16, %arg10 = %17, %arg11 = %18) -> (vector<8x1xf32>, vector<8x1xf32>, vector<8x128xf32>)  : i32 {
      %c8_i32_23 = arith.constant 8 : i32
      %56 = arith.muli %arg8, %c8_i32_23 : i32
      %57 = tpu.assume_multiple %56, 8 : i32
      %58 = arith.index_cast %57 : i32 to index
      %c0_24 = arith.constant 0 : index
      %59 = vector.load %arg6[%58, %c0_24] : memref<8x128xf32, #tpu.memory_space<vmem>>, vector<8x128xf32>
      %cst_25 = arith.constant dense<0.000000e+00> : vector<8x8xf32>
      %60 = tpu.matmul %15, %59, %cst_25 {dimension_numbers = #tpu.dot_dimension_numbers<[1], [1], [0], [0], [0, 0, 1, 0], [], []>} : vector<8x128xf32>, vector<8x128xf32>, vector<8x8xf32> -> vector<8x8xf32>
      %cst_26 = arith.constant dense<0xFF800000> : vector<8xf32>
      %61 = vector.multi_reduction <maximumf>, %60, %cst_26 [1] : vector<8x8xf32> to vector<8xf32>
      %62 = vector.shape_cast %61 : vector<8xf32> to vector<8x1xf32>
      %63 = arith.maximumf %arg9, %62 : vector<8x1xf32>
      %64 = arith.subf %arg9, %63 : vector<8x1xf32>
      %65 = math.exp %64 : vector<8x1xf32>
      %66 = vector.broadcast %63 : vector<8x1xf32> to vector<8x8xf32>
      %67 = arith.subf %60, %66 : vector<8x8xf32>
      %68 = math.exp %67 : vector<8x8xf32>
      %69 = arith.mulf %65, %arg10 : vector<8x1xf32>
      %cst_27 = arith.constant dense<0.000000e+00> : vector<8xf32>
      %70 = vector.multi_reduction <add>, %68, %cst_27 [1] : vector<8x8xf32> to vector<8xf32>
      %71 = vector.shape_cast %70 : vector<8xf32> to vector<8x1xf32>
      %72 = arith.addf %69, %71 : vector<8x1xf32>
      %73 = arith.index_cast %57 : i32 to index
      %c0_28 = arith.constant 0 : index
      %74 = vector.load %arg7[%73, %c0_28] : memref<8x128xf32, #tpu.memory_space<vmem>>, vector<8x128xf32>
      %75 = vector.broadcast %65 : vector<8x1xf32> to vector<8x128xf32>
      %76 = arith.mulf %75, %arg11 : vector<8x128xf32>
      %cst_29 = arith.constant dense<0.000000e+00> : vector<8x128xf32>
      %77 = tpu.matmul %68, %74, %cst_29 {dimension_numbers = #tpu.dot_dimension_numbers<[1], [0], [0], [1], [0, 0, 1, 1], [], []>} : vector<8x8xf32>, vector<8x128xf32>, vector<8x128xf32> -> vector<8x128xf32>
      %78 = arith.addf %76, %77 : vector<8x128xf32>
      scf.yield %63, %72, %78 : vector<8x1xf32>, vector<8x1xf32>, vector<8x128xf32>
    }
    %c8_i32_12 = arith.constant 8 : i32
    %22 = arith.muli %arg1, %c8_i32_12 : i32
    %23 = tpu.assume_multiple %22, 8 : i32
    %24 = arith.index_cast %23 : i32 to index
    %c0_13 = arith.constant 0 : index
    %25 = vector.load %arg6[%24, %c0_13] : memref<8x128xf32, #tpu.memory_space<vmem>>, vector<8x128xf32>
    %cst_14 = arith.constant dense<0.000000e+00> : vector<8x8xf32>
    %26 = tpu.matmul %15, %25, %cst_14 {dimension_numbers = #tpu.dot_dimension_numbers<[1], [1], [0], [0], [0, 0, 1, 0], [], []>} : vector<8x128xf32>, vector<8x128xf32>, vector<8x8xf32> -> vector<8x8xf32>
    %27 = tpu.iota {dimensions = array<i32: 1>} : vector<8x8xi32>
    %28 = tpu.iota {dimensions = array<i32: 0>} : vector<8x8xi32>
    %29 = arith.cmpi sle, %27, %28 : vector<8x8xi32>
    %cst_15 = arith.constant 0xFF800000 : f32
    %30 = vector.broadcast %cst_15 : f32 to vector<8x8xf32>
    %31 = arith.select %29, %26, %30 : vector<8x8xi1>, vector<8x8xf32>
    %cst_16 = arith.constant dense<0xFF800000> : vector<8xf32>
    %32 = vector.multi_reduction <maximumf>, %31, %cst_16 [1] : vector<8x8xf32> to vector<8xf32>
    %33 = vector.shape_cast %32 : vector<8xf32> to vector<8x1xf32>
    %34 = arith.maximumf %21#0, %33 : vector<8x1xf32>
    %35 = arith.subf %21#0, %34 : vector<8x1xf32>
    %36 = math.exp %35 : vector<8x1xf32>
    %37 = vector.broadcast %34 : vector<8x1xf32> to vector<8x8xf32>
    %38 = arith.subf %31, %37 : vector<8x8xf32>
    %39 = math.exp %38 : vector<8x8xf32>
    %40 = arith.mulf %36, %21#1 : vector<8x1xf32>
    %cst_17 = arith.constant dense<0.000000e+00> : vector<8xf32>
    %41 = vector.multi_reduction <add>, %39, %cst_17 [1] : vector<8x8xf32> to vector<8xf32>
    %42 = vector.shape_cast %41 : vector<8xf32> to vector<8x1xf32>
    %43 = arith.addf %40, %42 : vector<8x1xf32>
    %44 = arith.index_cast %23 : i32 to index
    %c0_18 = arith.constant 0 : index
    %45 = vector.load %arg7[%44, %c0_18] : memref<8x128xf32, #tpu.memory_space<vmem>>, vector<8x128xf32>
    %46 = vector.broadcast %36 : vector<8x1xf32> to vector<8x128xf32>
    %47 = arith.mulf %46, %21#2 : vector<8x128xf32>
    %cst_19 = arith.constant dense<0.000000e+00> : vector<8x128xf32>
    %48 = tpu.matmul %39, %45, %cst_19 {dimension_numbers = #tpu.dot_dimension_numbers<[1], [0], [0], [1], [0, 0, 1, 1], [], []>} : vector<8x8xf32>, vector<8x128xf32>, vector<8x128xf32> -> vector<8x128xf32>
    %49 = arith.addf %47, %48 : vector<8x128xf32>
    %50 = tpu.reciprocal %43 {approx = true} : vector<8x1xf32> -> vector<8x1xf32>
    %51 = vector.broadcast %50 : vector<8x1xf32> to vector<8x128xf32>
    %52 = arith.mulf %49, %51 : vector<8x128xf32>
    %c0_20 = arith.constant 0 : index
    %c0_21 = arith.constant 0 : index
    %c0_22 = arith.constant 0 : index
    %53 = vector.load %arg5[%c0_20, %c0_21, %c0_22] : memref<1x8x128xf32, #tpu.memory_space<vmem>>, vector<1x8x128xf32>
    %54 = vector.shape_cast %53 : vector<1x8x128xf32> to vector<8x128xf32>
    %55 = vector.shape_cast %52 : vector<8x128xf32> to vector<1x8x128xf32>
    tpu.vector_store %arg5[%c0_20, %c0_21, %c0_22], %55 {strides = array<i32>} : memref<1x8x128xf32, #tpu.memory_space<vmem>>, vector<1x8x128xf32>,
    return
  }
  func.func @transform_0(%arg0: i32, %arg1: i32) -> (i32, i32, i32) {
    %c0_i32 = arith.constant 0 : i32
    %c0_i32_0 = arith.constant 0 : i32
    %c0_i32_1 = arith.constant 0 : i32
    return %arg0, %c0_i32, %c0_i32_0 : i32, i32, i32
  }
  func.func @transform_1(%arg0: i32, %arg1: i32) -> (i32, i32) {
    %c0_i32 = arith.constant 0 : i32
    %c0_i32_0 = arith.constant 0 : i32
    %c0_i32_1 = arith.constant 0 : i32
    return %c0_i32, %c0_i32_0 : i32, i32
  }
  func.func @transform_2(%arg0: i32, %arg1: i32) -> (i32, i32) {
    %c0_i32 = arith.constant 0 : i32
    %c0_i32_0 = arith.constant 0 : i32
    %c0_i32_1 = arith.constant 0 : i32
    return %c0_i32, %c0_i32_0 : i32, i32
  }
  func.func @transform_3(%arg0: i32, %arg1: i32) -> (i32, i32, i32) {
    %c0_i32 = arith.constant 0 : i32
    %c0_i32_0 = arith.constant 0 : i32
    return %arg0, %arg1, %c0_i32 : i32, i32, i32
  }
}

</mosaic_0001>

<llo_original>
// kernel: tpu_custom_call.1
$region0: #{tpu_custom_call.1}
  #allocation0 [shape = 'u32[]', space=smem, size = 0x4, offset = 0x4, fixed_abs, tag = 'smem constant byte address 0x4 - core index']
  #allocation1 [shape = 'u32[72,128]{1,0:T(1,128)}', space=vmem, size = 0x9000, scoped, tag = 'internal scratch']
  #allocation2 [shape = 'f32[8,128]{1,0:T(8,128)}', space=vmem, size = 0x1000, scoped, tag = 'scratch operand']
  #allocation3 [shape = 'f32[8,128]{1,0:T(8,128)}', space=vmem, size = 0x1000, scoped, tag = 'scratch operand']
  %s0 = inlined_call_operand.hbm [shape: f32[2,8,32], index: 0, kind: input, shape index: {}]
  %s1 = inlined_call_operand.hbm [shape: f32[32,384], index: 1, kind: input, shape index: {}]
  %s2 = inlined_call_operand.hbm [shape: f32[1,384], index: 2, kind: input, shape index: {}]
  %s3 = inlined_call_operand.hbm [shape: f32[2,8,128], index: 3, kind: output, shape index: {}]
  %s4 = sld [smem:[#allocation0]]
  $region68: #{tpu_custom_call.1} parent=0
    _
  %s6 = ssub.s32 1, %s4
  %s7 = scalar_select 0, %s6, %s4
  $region1: #{tpu_custom_call.1} parent=0
    #allocation4 [shape = 'u8[8192]{0}', space=vmem, size = 0x2000, scoped, tag = 'input window, operand 0']
    #allocation5 [shape = 's32[2]{0}', space=sflag, size = 0x8, scoped, tag = 'scoped memory for tpu_custom_call.1']
    #allocation6 [shape = 's32[2]{0}', space=sflag, size = 0x8, scoped, tag = 'scoped memory for tpu_custom_call.1']
    #allocation7 [shape = 'u8[49152]{0}', space=vmem, size = 0xc000, scoped, tag = 'input window, operand 1, single buffered']
    #allocation8 [shape = 's32[1]{0}', space=sflag, size = 0x4, scoped, tag = 'scoped memory for tpu_custom_call.1']
    #allocation9 [shape = 'u8[1536]{0}', space=vmem, size = 0x800, scoped, tag = 'input window, operand 2, single buffered']
    #allocation10 [shape = 'u8[8192]{0}', space=vmem, size = 0x2000, scoped, tag = 'output window, operand 0']
    %8 = vsyncpa [#allocation5], 0
    %s9 = scalar_lea.sflag [#allocation5], 1
    %10 = vsyncpa %s9, 0
    %11 = vsyncpa [#allocation8], 0
    %12 = vsyncpa [#allocation6], 0
    %s13 = scalar_lea.sflag [#allocation6], 1
    %14 = vsyncpa %s13, 0
    loop: start=0, step=1, limit=4
    $region2: #{tpu_custom_call.1} parent=1 // loop_pre_header
      _
    $region3: #{tpu_custom_call.1} parent=1 // loop_header
      %s16 = sphi 0, %s20
      %p17 = scmp.ge.s32.totalorder %s16, 4
      %s23 = sphi 0, %s35
      %s24 = sphi 0, %s31
      %s25 = sphi 0, %s23
      %s26 = sphi 0, %s24
      %s27 = sphi 0, %s25
      %s28 = sphi 0, %s26
      %s38 = sphi 0, %s40
      %s41 = sphi 0, %s38
      %s42 = sphi 0, %s41
      %s58 = sphi 0, %s42
      %s62 = sphi 0, %s62
      %s64 = sphi 0, %s62
      %s65 = sphi 0, %s64
      %s79 = sphi 0, %s65
      %s83 = sphi 0, %s83
      %s85 = sphi 0, %s83
      %s86 = sphi 0, %s85
      %s100 = sphi 0, %s86
      %s108 = sphi 0, %s110
      %s111 = sphi 0, %s108
      %s112 = sphi 0, %s111
      %s128 = sphi 0, %s112
    $region4: #{tpu_custom_call.1} parent=1 // loop_header_branch
      %19 = sbr.rel (%p17) target = $region8
    $region5: #{tpu_custom_call.1} parent=1 // loop_body
      %s21 = ssub.s32 %s16, 1
      %s22 = ssub.s32 %s16, 2
      %s29 = sadd.s32 1, %s24
      %p30 = scmp.ge.s32.totalorder %s29, 1
      %s31 = scalar_select %p30, 0, %s29
      %s32 = sadd.s32 1, %s23
      %s33 = scalar_select %p30, %s32, %s23
      %p34 = scmp.ge.s32.totalorder %s33, 2
      %s35 = scalar_select %p34, 0, %s33
      %s36 = ssub.s32 %s23, %s35
      %p37 = scmp.eq.s32.totalorder %s36, 0
      %s39 = sadd.s32 %s38, 1
      %s40 = scalar_select %p37, %s38, %s39
      %p43 = pneg %p37
      %p44 = scmp.eq.s32.totalorder %s16, 1
      %p45 = por %p43, %p44
      %p46 = scmp.ne.s32.totalorder %s38, %s41
      %p47 = scmp.eq.s32.totalorder %s16, 0
      %p48 = por %p46, %p47
      %p49 = scmp.ne.s32.totalorder %s38, %s41
      %p50 = scmp.eq.s32.totalorder %s21, 1
      %p51 = por %p49, %p50
      %p52 = scmp.ne.s32.totalorder %s41, %s42
      %p53 = scmp.eq.s32.totalorder %s21, 0
      %p54 = por %p52, %p53
      %p55 = scmp.ne.s32.totalorder %s41, %s42
      %p56 = scmp.eq.s32.totalorder %s22, 1
      %p57 = por %p55, %p56
      %p59 = scmp.ne.s32.totalorder %s42, %s58
      %p60 = scmp.eq.s32.totalorder %s22, 0
      %p61 = por %p59, %p60
      %s63 = sadd.s32 %s62, 1
      %p66 = scmp.eq.s32.totalorder %s16, 1
      %p67 = scmp.ne.s32.totalorder %s62, %s64
      %p68 = scmp.eq.s32.totalorder %s16, 0
      %p69 = por %p67, %p68
      %p70 = scmp.ne.s32.totalorder %s62, %s64
      %p71 = scmp.eq.s32.totalorder %s21, 1
      %p72 = por %p70, %p71
      %p73 = scmp.ne.s32.totalorder %s64, %s65
      %p74 = scmp.eq.s32.totalorder %s21, 0
      %p75 = por %p73, %p74
      %p76 = scmp.ne.s32.totalorder %s64, %s65
      %p77 = scmp.eq.s32.totalorder %s22, 1
      %p78 = por %p76, %p77
      %p80 = scmp.ne.s32.totalorder %s65, %s79
      %p81 = scmp.eq.s32.totalorder %s22, 0
      %p82 = por %p80, %p81
      %s84 = sadd.s32 %s83, 1
      %p87 = scmp.eq.s32.totalorder %s16, 1
      %p88 = scmp.ne.s32.totalorder %s83, %s85
      %p89 = scmp.eq.s32.totalorder %s16, 0
      %p90 = por %p88, %p89
      %p91 = scmp.ne.s32.totalorder %s83, %s85
      %p92 = scmp.eq.s32.totalorder %s21, 1
      %p93 = por %p91, %p92
      %p94 = scmp.ne.s32.totalorder %s85, %s86
      %p95 = scmp.eq.s32.totalorder %s21, 0
      %p96 = por %p94, %p95
      %p97 = scmp.ne.s32.totalorder %s85, %s86
      %p98 = scmp.eq.s32.totalorder %s22, 1
      %p99 = por %p97, %p98
      %p101 = scmp.ne.s32.totalorder %s86, %s100
      %p102 = scmp.eq.s32.totalorder %s22, 0
      %p103 = por %p101, %p102
      %s104 = ssub.s32 %s23, %s35
      %s105 = ssub.s32 %s24, %s31
      %s106 = sor.u32 %s104, %s105
      %p107 = scmp.eq.s32.totalorder %s106, 0
      %s109 = sadd.s32 %s108, 1
      %s110 = scalar_select %p107, %s108, %s109
      %p113 = pneg %p107
      %p114 = scmp.eq.s32.totalorder %s16, 1
      %p115 = por %p113, %p114
      %p116 = scmp.ne.s32.totalorder %s108, %s111
      %p117 = scmp.eq.s32.totalorder %s16, 0
      %p118 = por %p116, %p117
      %p119 = scmp.ne.s32.totalorder %s108, %s111
      %p120 = scmp.eq.s32.totalorder %s21, 1
      %p121 = por %p119, %p120
      %p122 = scmp.ne.s32.totalorder %s111, %s112
      %p123 = scmp.eq.s32.totalorder %s21, 0
      %p124 = por %p122, %p123
      %p125 = scmp.ne.s32.totalorder %s111, %s112
      %p126 = scmp.eq.s32.totalorder %s22, 1
      %p127 = por %p125, %p126
      %p129 = scmp.ne.s32.totalorder %s112, %s128
      %p130 = scmp.eq.s32.totalorder %s22, 0
      %p131 = por %p129, %p130
      %p132 = scmp.le.s32.totalorder 1, %s16
      %p133 = scmp.lt.s32.totalorder %s16, 3
      %p134 = pnand %p132, %p133
      %p135 = pneg %p134
      // Predicated region
      $region9: #{tpu_custom_call.1} parent=5 // pred_check
        _
      $region10: #{tpu_custom_call.1} parent=5 // pred_check_branch
        %137 = sbr.rel (%p134) target = $region12
      $region11: #{tpu_custom_call.1} parent=5 // pred_region
        %s138 = ssub.s32 %s16, 1
        // Predicated region
        $region13: #{tpu_custom_call.1} parent=11 // pred_check
          %p139 = pneg %p75
        $region14: #{tpu_custom_call.1} parent=11 // pred_check_branch
          %141 = sbr.rel (%p139) target = $region16
        $region15: #{tpu_custom_call.1} parent=11 // pred_region
          %143 = vsyncadd [#allocation8], 0
          %s144 = sshll.u32 %s1, 4
          %s145 = int_to_ptr.hbm [resolvable:$true] %s144
          %s146 = sshll.u32 [#allocation7], 4
          %s147 = int_to_ptr.vmem [resolvable:$true] %s146
          %152 = dma.hbm_to_vmem [thread:$0]  %s145, 1536, %s147, [#allocation8], 384, 384, 24
        $region16: #{tpu_custom_call.1} parent=11 // pred_fallthru
          _
        // Predicated region
        $region17: #{tpu_custom_call.1} parent=11 // pred_check
          %p153 = pneg %p96
        $region18: #{tpu_custom_call.1} parent=11 // pred_check_branch
          %155 = sbr.rel (%p153) target = $region20
        $region19: #{tpu_custom_call.1} parent=11 // pred_region
          %157 = vsyncadd [#allocation8], 0
          %s159 = sshll.u32 %s2, 4
          %s160 = int_to_ptr.hbm [resolvable:$true] %s159
          %s161 = sshll.u32 [#allocation9], 4
          %s162 = int_to_ptr.vmem [resolvable:$true] %s161
          %164 = dma.hbm_to_vmem [thread:$0]  %s160, 48, %s162, [#allocation8]
        $region20: #{tpu_custom_call.1} parent=11 // pred_fallthru
          _
      $region12: #{tpu_custom_call.1} parent=5 // pred_fallthru
        _
      %p165 = scmp.lt.s32.totalorder %s16, 2
      // Predicated region
      $region21: #{tpu_custom_call.1} parent=5 // pred_check
        %p166 = pneg %p165
      $region22: #{tpu_custom_call.1} parent=5 // pred_check_branch
        %168 = sbr.rel (%p166) target = $region24
      $region23: #{tpu_custom_call.1} parent=5 // pred_region
        // Predicated region
        $region25: #{tpu_custom_call.1} parent=23 // pred_check
          %p169 = pneg %p48
        $region26: #{tpu_custom_call.1} parent=23 // pred_check_branch
          %171 = sbr.rel (%p169) target = $region28
        $region27: #{tpu_custom_call.1} parent=23 // pred_region
          %s172 = sand.u32 %s38, 1
          %s173 = scalar_lea.sflag [#allocation5], %s172
          %s174 = sand.u32 %s38, 1
          %s175 = smul.addr %s174, 8
          %s176 = scalar_lea.vmem [#allocation4], %s175
          %178 = vsyncadd %s173, 0
          %s179 = smul.addr %s23, 8
          %s180 = scalar_lea.hbm %s0, %s179
          %s182 = sshll.u32 %s180, 4
          %s183 = int_to_ptr.hbm [resolvable:$true] %s182
          %s184 = sshll.u32 %s176, 4
          %s185 = int_to_ptr.vmem [resolvable:$true] %s184
          %187 = dma.hbm_to_vmem [thread:$0]  %s183, 128, %s185, %s173
        $region28: #{tpu_custom_call.1} parent=23 // pred_fallthru
          _
      $region24: #{tpu_custom_call.1} parent=5 // pred_fallthru
        _
      %p188 = scmp.le.s32.totalorder 1, %s16
      %p189 = scmp.lt.s32.totalorder %s16, 3
      %p190 = pnand %p188, %p189
      %p191 = pneg %p190
      // Predicated region
      $region29: #{tpu_custom_call.1} parent=5 // pred_check
        _
      $region30: #{tpu_custom_call.1} parent=5 // pred_check_branch
        %193 = sbr.rel (%p190) target = $region32
      $region31: #{tpu_custom_call.1} parent=5 // pred_region
        %s194 = ssub.s32 %s16, 1
        %s195 = sand.u32 %s41, 1
        %s196 = scalar_lea.sflag [#allocation5], %s195
        %s197 = sand.u32 %s41, 1
        %s198 = smul.addr %s197, 8
        %s199 = scalar_lea.vmem [#allocation4], %s198
        // Predicated region
        $region33: #{tpu_custom_call.1} parent=31 // pred_check
          %p200 = pneg %p54
        $region34: #{tpu_custom_call.1} parent=31 // pred_check_branch
          %202 = sbr.rel (%p200) target = $region36
        $region35: #{tpu_custom_call.1} parent=31 // pred_region
          %204 = dma.done %s196, 128
        $region36: #{tpu_custom_call.1} parent=31 // pred_fallthru
          _
        // Predicated region
        $region37: #{tpu_custom_call.1} parent=31 // pred_check
          %p205 = pneg %p75
        $region38: #{tpu_custom_call.1} parent=31 // pred_check_branch
          %207 = sbr.rel (%p205) target = $region40
        $region39: #{tpu_custom_call.1} parent=31 // pred_region
          %209 = dma.done [#allocation8], 1536
        $region40: #{tpu_custom_call.1} parent=31 // pred_fallthru
          _
        // Predicated region
        $region41: #{tpu_custom_call.1} parent=31 // pred_check
          %p210 = pneg %p96
        $region42: #{tpu_custom_call.1} parent=31 // pred_check_branch
          %212 = sbr.rel (%p210) target = $region44
        $region43: #{tpu_custom_call.1} parent=31 // pred_region
          %214 = dma.done [#allocation8], 48
        $region44: #{tpu_custom_call.1} parent=31 // pred_fallthru
          _
        %s215 = sand.u32 %s41, 1
        %s216 = scalar_lea.sflag [#allocation5], %s215
        %s217 = sand.u32 %s41, 1
        %s218 = smul.addr %s217, 8
        %s219 = scalar_lea.vmem [#allocation4], %s218
        %p220 = pneg %p54
        %p221 = pneg %p51
        %p222 = pneg %p75
        %p223 = pneg %p72
        %p224 = pneg %p96
        %p225 = pneg %p93
        %p226 = pneg %p124
        %p227 = pneg %p121
        %s228 = sand.u32 %s111, 1
        %s229 = scalar_lea.sflag [#allocation6], %s228
        %s230 = sand.u32 %s111, 1
        %s231 = smul.addr %s230, 8
        %s232 = scalar_lea.vmem [#allocation10], %s231
        %p233 = scmp.eq.s32.totalorder %s26, 0
        // Predicated region
        $region45: #{tpu_custom_call.1} parent=31 // pred_check
          %p234 = pneg %p233
        $region46: #{tpu_custom_call.1} parent=31 // pred_check_branch
          %236 = sbr.rel (%p234) target = $region48
        $region47: #{tpu_custom_call.1} parent=31 // pred_region
          %v237 = vld [vmem:[%s199] sm:$0xff]
          %v238 = vld [vmem:[#allocation7 + $0x8] sm:$0xff]
          %v239 = vld [vmem:[#allocation7 + $0x20] sm:$0xff]
          %v240 = vld [vmem:[#allocation7 + $0x38] sm:$0xff]
          %v241 = vld [vmem:[#allocation7 + $0x50] sm:$0xff]
          %v242 = vld [vmem:[#allocation9 + $0x1] sm:$0x1]
          %v244 = vperm.slane %v242, 0
          %vm246 = vcmask 261120
          %v248 = vsel %vm246, %v237, 0
          %250 = vmatpush.msra.mxu0 0.0
          %251 = vmatpush.msra.mxu0 0.0
          %252 = vmatpush.msra.mxu0 0.0
          %253 = vmatpush.msra.mxu0 0.0
          %254 = vmatpush.msra.mxu0 0.0
          %255 = vmatpush.msra.mxu0 0.0
          %256 = vmatpush.msra.mxu0 0.0
          %257 = vmatpush.msra.mxu0 0.0
          %258 = vmatpush.msra.mxu0 0.0
          %259 = vmatpush.msra.mxu0 0.0
          %260 = vmatpush.msra.mxu0 0.0
          %261 = vmatpush.msra.mxu0 0.0
          %262 = vmatpush.msra.mxu0 %v241
          %263 = vmatpush.msra.mxu0 %v240
          %264 = vmatpush.msra.mxu0 %v239
          %265 = vmatpush.msra.mxu0 %v238
          %266 = vmatmul.f32.gmra.mxu0 %v248
          %v267 = vpop.f32.mrf.mxu0
          %v268 = vadd.f32 %v244, %v267
          %269 = vdwg.mxu0
          %v270 = vld [vmem:[#allocation7 + $0x10] sm:$0xff]
          %v271 = vld [vmem:[#allocation7 + $0x28] sm:$0xff]
          %v272 = vld [vmem:[#allocation7 + $0x40] sm:$0xff]
          %v273 = vld [vmem:[#allocation7 + $0x58] sm:$0xff]
          %v274 = vld [vmem:[#allocation9 + $0x2] sm:$0x1]
          %v276 = vperm.slane %v274, 0
          %278 = vmatpush.msra.mxu0 0.0
          %279 = vmatpush.msra.mxu0 0.0
          %280 = vmatpush.msra.mxu0 0.0
          %281 = vmatpush.msra.mxu0 0.0
          %282 = vmatpush.msra.mxu0 0.0
          %283 = vmatpush.msra.mxu0 0.0
          %284 = vmatpush.msra.mxu0 0.0
          %285 = vmatpush.msra.mxu0 0.0
          %286 = vmatpush.msra.mxu0 0.0
          %287 = vmatpush.msra.mxu0 0.0
          %288 = vmatpush.msra.mxu0 0.0
          %289 = vmatpush.msra.mxu0 0.0
          %290 = vmatpush.msra.mxu0 %v273
          %291 = vmatpush.msra.mxu0 %v272
          %292 = vmatpush.msra.mxu0 %v271
          %293 = vmatpush.msra.mxu0 %v270
          %294 = vmatmul.f32.gmra.mxu0 %v248
          %v295 = vpop.f32.mrf.mxu0
          %v296 = vadd.f32 %v276, %v295
          %297 = vdwg.mxu0
          %298 = vst [vmem:[#allocation2] sm:$0xff] %v268
          %299 = vst [vmem:[#allocation3] sm:$0xff] %v296
        $region48: #{tpu_custom_call.1} parent=31 // pred_fallthru
          _
        %s300 = smul.u32 %s26, 8
        %s301 = scalar_lea.vmem %s199, %s300 [#allocation4]
        %v302 = vld [vmem:[%s301] sm:$0xff]
        %v303 = vld [vmem:[#allocation7] sm:$0xff]
        %v304 = vld [vmem:[#allocation7 + $0x18] sm:$0xff]
        %v305 = vld [vmem:[#allocation7 + $0x30] sm:$0xff]
        %v306 = vld [vmem:[#allocation7 + $0x48] sm:$0xff]
        %v307 = vld [vmem:[#allocation9] sm:$0x1]
        %v309 = vperm.slane %v307, 0
        %vm311 = vcmask 261120
        %v313 = vsel %vm311, %v302, 0
        %315 = vmatpush.msra.mxu0 0.0
        %316 = vmatpush.msra.mxu0 0.0
        %317 = vmatpush.msra.mxu0 0.0
        %318 = vmatpush.msra.mxu0 0.0
        %319 = vmatpush.msra.mxu0 0.0
        %320 = vmatpush.msra.mxu0 0.0
        %321 = vmatpush.msra.mxu0 0.0
        %322 = vmatpush.msra.mxu0 0.0
        %323 = vmatpush.msra.mxu0 0.0
        %324 = vmatpush.msra.mxu0 0.0
        %325 = vmatpush.msra.mxu0 0.0
        %326 = vmatpush.msra.mxu0 0.0
        %327 = vmatpush.msra.mxu0 %v306
        %328 = vmatpush.msra.mxu0 %v305
        %329 = vmatpush.msra.mxu0 %v304
        %330 = vmatpush.msra.mxu0 %v303
        %331 = vmatmul.f32.gmra.mxu0 %v313
        %v332 = vpop.f32.mrf.mxu0
        %v333 = vadd.f32 %v309, %v332
        %334 = vdwg.mxu0
        %v335 = vmul.f32 %v333, 0.17677669
        // While loop
        $region49: #{tpu_custom_call.1} parent=31 // loop_pre_header
          _
        $region50: #{tpu_custom_call.1} parent=31 // loop_header
          %s337 = sphi 0, %s339
          %p338 = scmp.ge.s32.totalorder %s337, %s26
          %v342 = vphi -inf, %v372
          %v343 = vphi 0.0, %v383
          %v344 = vphi 0.0, %v410
        $region51: #{tpu_custom_call.1} parent=31 // loop_header_branch
          %341 = sbr.rel (%p338) target = $region55
        $region52: #{tpu_custom_call.1} parent=31 // loop_body
          %s345 = smul.u32 %s337, 8
          %s346 = scalar_lea.vmem [#allocation2], %s345
          %v347 = vld [vmem:[%s346] sm:$0xff]
          %348 = vmatpush.xpose.msra.mxu0 0.0
          %349 = vmatpush.xpose.msra.mxu0 0.0
          %350 = vmatpush.xpose.msra.mxu0 0.0
          %351 = vmatpush.xpose.msra.mxu0 0.0
          %352 = vmatpush.xpose.msra.mxu0 0.0
          %353 = vmatpush.xpose.msra.mxu0 0.0
          %354 = vmatpush.xpose.msra.mxu0 0.0
          %355 = vmatpush.xpose.msra.mxu0 0.0
          %356 = vmatpush.xpose.msra.mxu0 0.0
          %357 = vmatpush.xpose.msra.mxu0 0.0
          %358 = vmatpush.xpose.msra.mxu0 0.0
          %359 = vmatpush.xpose.msra.mxu0 0.0
          %360 = vmatpush.xpose.msra.mxu0 0.0
          %361 = vmatpush.xpose.msra.mxu0 0.0
          %362 = vmatpush.xpose.msra.mxu0 0.0
          %363 = vmatpush.xpose.msra.mxu0 %v347
          %364 = vmatmul.f32.gmra.mxu0 %v335
          %v365 = vpop.f32.mrf.mxu0
          %v366 = vadd.f32 0.0, %v365
          %367 = vdwg.mxu0
          %vm368 = vcmask 64512
          %v369 = vsel %vm368, %v366, -inf
          %370 = vmax.xlane.f32.xlu0 %v369
          %v371 = vpop.xlane.xlu0 %370
          %v372 = vmax.f32 %v342, %v371
          %v373 = vsub.f32 %v342, %v372
          %v374 = vmul.f32 %v373, 1.442695
          %v375 = vpow.pop %v374
          %v376 = vsub.f32 %v366, %v372
          %v377 = vmul.f32 %v376, 1.442695
          %v378 = vpow.pop %v377
          %v379 = vmul.f32 %v375, %v343
          %v380 = vsel %vm368, %v378, 0.0
          %381 = vadd.xlane.f32.xlu0 %v380
          %v382 = vpop.xlane.xlu0 %381
          %v383 = vadd.f32 %v379, %v382
          %s384 = scalar_lea.vmem [#allocation3], %s345
          %v385 = vld [vmem:[%s384] sm:$0xff]
          %v386 = vmul.f32 %v375, %v344
          %v388 = vsel %vm368, %v378, 0
          %390 = vmatpush.msra.mxu0 0.0
          %391 = vmatpush.msra.mxu0 0.0
          %392 = vmatpush.msra.mxu0 0.0
          %393 = vmatpush.msra.mxu0 0.0
          %394 = vmatpush.msra.mxu0 0.0
          %395 = vmatpush.msra.mxu0 0.0
          %396 = vmatpush.msra.mxu0 0.0
          %397 = vmatpush.msra.mxu0 0.0
          %398 = vmatpush.msra.mxu0 0.0
          %399 = vmatpush.msra.mxu0 0.0
          %400 = vmatpush.msra.mxu0 0.0
          %401 = vmatpush.msra.mxu0 0.0
          %402 = vmatpush.msra.mxu0 0.0
          %403 = vmatpush.msra.mxu0 0.0
          %404 = vmatpush.msra.mxu0 0.0
          %405 = vmatpush.msra.mxu0 %v385
          %406 = vmatmul.f32.gmra.mxu0 %v388
          %v407 = vpop.f32.mrf.mxu0
          %v408 = vadd.f32 0.0, %v407
          %409 = vdwg.mxu0
          %v410 = vadd.f32 %v386, %v408
        $region53: #{tpu_custom_call.1} parent=31 // loop_footer
          %s339 = sadd.s32 %s337, 1
        $region54: #{tpu_custom_call.1} parent=31 // loop_footer_branch
          %336 = sbr.rel target = $region50
        $region55: #{tpu_custom_call.1} parent=31 // loop_exit
          _
        %s411 = scalar_lea.vmem [#allocation2], %s300
        %v412 = vld [vmem:[%s411] sm:$0xff]
        %413 = vmatpush.xpose.msra.mxu0 0.0
        %414 = vmatpush.xpose.msra.mxu0 0.0
        %415 = vmatpush.xpose.msra.mxu0 0.0
        %416 = vmatpush.xpose.msra.mxu0 0.0
        %417 = vmatpush.xpose.msra.mxu0 0.0
        %418 = vmatpush.xpose.msra.mxu0 0.0
        %419 = vmatpush.xpose.msra.mxu0 0.0
        %420 = vmatpush.xpose.msra.mxu0 0.0
        %421 = vmatpush.xpose.msra.mxu0 0.0
        %422 = vmatpush.xpose.msra.mxu0 0.0
        %423 = vmatpush.xpose.msra.mxu0 0.0
        %424 = vmatpush.xpose.msra.mxu0 0.0
        %425 = vmatpush.xpose.msra.mxu0 0.0
        %426 = vmatpush.xpose.msra.mxu0 0.0
        %427 = vmatpush.xpose.msra.mxu0 0.0
        %428 = vmatpush.xpose.msra.mxu0 %v412
        %429 = vmatmul.f32.gmra.mxu0 %v335
        %v430 = vpop.f32.mrf.mxu0
        %v431 = vadd.f32 0.0, %v430
        %432 = vdwg.mxu0
        %v433 = vlaneseq
        %v434 = vand.u32 %v433, 127
        %v435 = vlaneseq
        %v436 = vshrl.u32 %v435, 7
        %vm437 = vcmp.le.s32.totalorder %v434, %v436
        %v438 = vsel %vm437, %v431, -inf
        %vm439 = vcmask 64512
        %v440 = vsel %vm439, %v438, -inf
        %441 = vmax.xlane.f32.xlu0 %v440
        %v442 = vpop.xlane.xlu0 %441
        %v443 = vmax.f32 %v342, %v442
        %v444 = vsub.f32 %v342, %v443
        %v445 = vmul.f32 %v444, 1.442695
        %v446 = vpow.pop %v445
        %v447 = vsub.f32 %v438, %v443
        %v448 = vmul.f32 %v447, 1.442695
        %v449 = vpow.pop %v448
        %v450 = vmul.f32 %v446, %v343
        %v451 = vsel %vm439, %v449, 0.0
        %452 = vadd.xlane.f32.xlu0 %v451
        %v453 = vpop.xlane.xlu0 %452
        %v454 = vadd.f32 %v450, %v453
        %s455 = scalar_lea.vmem [#allocation3], %s300
        %v456 = vld [vmem:[%s455] sm:$0xff]
        %v457 = vmul.f32 %v446, %v344
        %v459 = vsel %vm439, %v449, 0
        %461 = vmatpush.msra.mxu0 0.0
        %462 = vmatpush.msra.mxu0 0.0
        %463 = vmatpush.msra.mxu0 0.0
        %464 = vmatpush.msra.mxu0 0.0
        %465 = vmatpush.msra.mxu0 0.0
        %466 = vmatpush.msra.mxu0 0.0
        %467 = vmatpush.msra.mxu0 0.0
        %468 = vmatpush.msra.mxu0 0.0
        %469 = vmatpush.msra.mxu0 0.0
        %470 = vmatpush.msra.mxu0 0.0
        %471 = vmatpush.msra.mxu0 0.0
        %472 = vmatpush.msra.mxu0 0.0
        %473 = vmatpush.msra.mxu0 0.0
        %474 = vmatpush.msra.mxu0 0.0
        %475 = vmatpush.msra.mxu0 0.0
        %476 = vmatpush.msra.mxu0 %v456
        %477 = vmatmul.f32.gmra.mxu0 %v459
        %v478 = vpop.f32.mrf.mxu0
        %v479 = vadd.f32 0.0, %v478
        %480 = vdwg.mxu0
        %v481 = vadd.f32 %v457, %v479
        %v482 = vrcp.pop %v454
        %v483 = vmul.f32 %v481, %v482
        %484 = vst [vmem:[%s232] sm:$0xff] %v483
        %s485 = sand.u32 %s111, 1
        %s486 = scalar_lea.sflag [#allocation6], %s485
        %s487 = sand.u32 %s111, 1
        %s488 = smul.addr %s487, 8
        %s489 = scalar_lea.vmem [#allocation10], %s488
        // Predicated region
        $region56: #{tpu_custom_call.1} parent=31 // pred_check
          %p490 = pneg %p121
        $region57: #{tpu_custom_call.1} parent=31 // pred_check_branch
          %492 = sbr.rel (%p490) target = $region59
        $region58: #{tpu_custom_call.1} parent=31 // pred_region
          %494 = vsyncadd %s486, 0
          %s495 = sadd.s32 %s26, %s25
          %s496 = smul.addr %s495, 8
          %s497 = scalar_lea.hbm %s3, %s496
          %s499 = sshll.u32 %s489, 4
          %s500 = int_to_ptr.vmem [resolvable:$true] %s499
          %s501 = sshll.u32 %s497, 4
          %s502 = int_to_ptr.hbm [resolvable:$true] %s501
          %504 = dma.vmem_to_hbm [thread:$0]  %s500, 128, %s502, %s486
        $region59: #{tpu_custom_call.1} parent=31 // pred_fallthru
          _
      $region32: #{tpu_custom_call.1} parent=5 // pred_fallthru
        _
      %p505 = scmp.le.s32.totalorder 2, %s16
      // Predicated region
      $region60: #{tpu_custom_call.1} parent=5 // pred_check
        %p506 = pneg %p505
      $region61: #{tpu_custom_call.1} parent=5 // pred_check_branch
        %508 = sbr.rel (%p506) target = $region63
      $region62: #{tpu_custom_call.1} parent=5 // pred_region
        %s509 = ssub.s32 %s16, 2
        // Predicated region
        $region64: #{tpu_custom_call.1} parent=62 // pred_check
          %p510 = pneg %p127
        $region65: #{tpu_custom_call.1} parent=62 // pred_check_branch
          %512 = sbr.rel (%p510) target = $region67
        $region66: #{tpu_custom_call.1} parent=62 // pred_region
          %s513 = sand.u32 %s112, 1
          %s514 = scalar_lea.sflag [#allocation6], %s513
          %s515 = sand.u32 %s112, 1
          %s516 = smul.addr %s515, 8
          %s517 = scalar_lea.vmem [#allocation10], %s516
          %519 = dma.done %s514, 128
        $region67: #{tpu_custom_call.1} parent=62 // pred_fallthru
          _
      $region63: #{tpu_custom_call.1} parent=5 // pred_fallthru
        _
    $region6: #{tpu_custom_call.1} parent=1 // loop_footer
      %s20 = sadd.s32 1, %s16
    $region7: #{tpu_custom_call.1} parent=1 // loop_footer_branch
      %15 = sbr.rel target = $region3
    $region8: #{tpu_custom_call.1} parent=1 // loop_exit
      _
    %520 = vsyncpa [#allocation5], 1
    %s521 = scalar_lea.sflag [#allocation5], 1
    %522 = vsyncpa %s521, 1
    %523 = vsyncpa [#allocation8], 1
    %524 = vsyncpa [#allocation6], 1
    %s525 = scalar_lea.sflag [#allocation6], 1
    %526 = vsyncpa %s525, 1

</llo_original>
